<compile_context>
chip_gen: v5e
topology: v5e:2x2
jax: 0.10.0
libtpu: 0.0.40
codegen_flags: <defaults>
</compile_context>

<pallas_src>
import functools

import jax
import jax.numpy as jnp
from jax.experimental import pallas as pl
from jax.experimental.pallas import tpu as pltpu

EPS = 1e-5          # nn.BatchNorm1d default eps
NEG_SLOPE = 0.01    # nn.LeakyReLU default negative_slope


def bottleneck_kernel(x_ref, w_ref, scale_ref, shift_ref, out_ref, *, cin):
    """One (Cin, L_TILE) tile of one batch element -> (Cin+Cout, L_TILE) output tile."""
    x = x_ref[...]                                  # (Cin, L_TILE), original dtype
    xf = x.astype(jnp.float32)

    # --- BatchNorm1d (pre-folded scale/shift) + LeakyReLU(0.01) --------------
    h = xf * scale_ref[...] + shift_ref[...]        # (Cin, L_TILE)
    h = jnp.maximum(h, NEG_SLOPE * h)

    # --- Conv1d(kernel_size=1, bias=False) == channel matmul on the MXU ------
    mm_dtype = jnp.bfloat16 if x_ref.dtype == jnp.bfloat16 else jnp.float32
    conv = jnp.dot(w_ref[...].astype(mm_dtype), h.astype(mm_dtype),
                   preferred_element_type=jnp.float32)   # (Cout, L_TILE)

    # --- torch.cat([x, out], dim=1): two aligned slice stores, no concat temp -
    out_ref[:cin, :] = x.astype(out_ref.dtype)
    out_ref[cin:, :] = conv.astype(out_ref.dtype)


def _pick_l_tile(length, target_lanes=1024):
    """Largest multiple of 128 dividing `length`, capped at `target_lanes`.
    Falls back to the full length if it is not 128-aligned (block must then
    equal the full array dim to satisfy the (8,128) constraint)."""
    if length % 128 != 0:
        return length
    t = min(target_lanes, length)
    t -= t % 128
    while t >= 128:
        if length % t == 0:
            return t
        t -= 128
    return length


def bottleneck_layer(x, w, gamma, beta):
    """x: (N, Cin, L); w: (Cout, Cin); gamma/beta: (Cin,). Returns (N, Cin+Cout, L)."""
    N, Cin, L = x.shape
    Cout = w.shape[0]

    # --- BN batch statistics hoisted to XLA (centered variance, f32) ---------
    xf = x.astype(jnp.float32)
    mean = jnp.mean(xf, axis=(0, 2))                                   # (Cin,)
    var = jnp.mean(jnp.square(xf - mean[None, :, None]), axis=(0, 2))  # (Cin,)
    scale = gamma.astype(jnp.float32) * jax.lax.rsqrt(var + EPS)       # (Cin,)
    shift = beta.astype(jnp.float32) - mean * scale                    # (Cin,)

    L_TILE = _pick_l_tile(L)
    grid = (N, L // L_TILE)

    # VMEM budget: double-buffered input + output tiles + params, with headroom;
    # capped at 32 MiB so it is safe on v5e/v6e/v7x alike.
    itemsize = jnp.dtype(x.dtype).itemsize
    tile_bytes = (Cin * L_TILE + (Cin + Cout) * L_TILE) * itemsize
    param_bytes = (Cout * Cin) * jnp.dtype(w.dtype).itemsize + 2 * Cin * 4
    vmem_bytes = int(min(max(8 * (tile_bytes + param_bytes), 4 << 20), 32 << 20))

    kernel = functools.partial(bottleneck_kernel, cin=Cin)

    out = pl.pallas_call(
        kernel,
        out_shape=jax.ShapeDtypeStruct((N, Cin + Cout, L), x.dtype),
        grid=grid,
        in_specs=[
            # x: (N, Cin, L) -> kernel sees lane-dense (Cin, L_TILE), batch squeezed.
            pl.BlockSpec((pl.Squeezed(), Cin, L_TILE), lambda n, l: (n, 0, l)),
            pl.BlockSpec((Cout, Cin), lambda n, l: (0, 0)),
            pl.BlockSpec((Cin, 1), lambda n, l: (0, 0)),
            pl.BlockSpec((Cin, 1), lambda n, l: (0, 0)),
        ],
        out_specs=pl.BlockSpec((pl.Squeezed(), Cin + Cout, L_TILE),
                               lambda n, l: (n, 0, l)),
        compiler_params=pltpu.CompilerParams(
            dimension_semantics=("parallel", "parallel"),
            vmem_limit_bytes=vmem_bytes,
        ),
    )(x, w, scale.reshape(Cin, 1), shift.reshape(Cin, 1))

    return out


def _reference(x, w, gamma, beta):
    """Pure-JAX reference mirroring the PyTorch forward (training-mode BN)."""
    mean = jnp.mean(x, axis=(0, 2), keepdims=True)
    var = jnp.mean(jnp.square(x - mean), axis=(0, 2), keepdims=True)
    h = (x - mean) * jax.lax.rsqrt(var + EPS) * gamma[None, :, None] + beta[None, :, None]
    h = jnp.where(h > 0, h, NEG_SLOPE * h)
    conv = jnp.einsum('oc,ncl->nol', w, h)
    return jnp.concatenate([x, conv], axis=1)


if __name__ == "__main__":
    key = jax.random.PRNGKey(0)
    k1, k2, k3, k4 = jax.random.split(key, 4)

    # Small shapes consistent with the module: (batch, in_channels, length)
    N, Cin, Cout, L = 2, 4, 8, 16
    x = jax.random.normal(k1, (N, Cin, L), dtype=jnp.float32)

    # PyTorch conv1 weight is (Cout, Cin, 1); trailing kernel dim squeezed here.
    w = jax.random.normal(k2, (Cout, Cin), dtype=jnp.float32) * 0.1
    gamma = 1.0 + 0.1 * jax.random.normal(k3, (Cin,), dtype=jnp.float32)
    beta = 0.1 * jax.random.normal(k4, (Cin,), dtype=jnp.float32)

    y = bottleneck_layer(x, w, gamma, beta)
    y = jax.block_until_ready(y)

    assert y.shape == (N, Cin + Cout, L)
    y_ref = _reference(x, w, gamma, beta)
    assert jnp.allclose(y, y_ref, atol=1e-4, rtol=1e-4), "mismatch vs JAX reference"

    print("KERNEL_OK")
</pallas_src>

<mosaic_0001>
module attributes {stable_mosaic.version = 11 : i64} {
  func.func @bottleneck_kernel(%arg0: i32, %arg1: i32, %arg2: memref<1x4x16xf32, #tpu.memory_space<vmem>>, %arg3: memref<8x4xf32, #tpu.memory_space<vmem>>, %arg4: memref<4x1xf32, #tpu.memory_space<vmem>>, %arg5: memref<4x1xf32, #tpu.memory_space<vmem>>, %arg6: memref<1x12x16xf32, #tpu.memory_space<vmem>>) attributes {dimension_semantics = [#tpu.dimension_semantics<parallel>, #tpu.dimension_semantics<parallel>], iteration_bounds = array<i64: 2, 1>, scalar_prefetch = 0 : i64, scratch_operands = 0 : i64, tpu.core_type = #tpu.core_type<tc>, window_params = [{transform_indices = @transform_0, window_bounds = array<i64: 1, 4, 16>}, {pipeline_mode = #tpu.pipeline_mode<synchronous>, transform_indices = @transform_1, window_bounds = array<i64: 8, 4>}, {pipeline_mode = #tpu.pipeline_mode<synchronous>, transform_indices = @transform_2, window_bounds = array<i64: 4, 1>}, {pipeline_mode = #tpu.pipeline_mode<synchronous>, transform_indices = @transform_3, window_bounds = array<i64: 4, 1>}, {transform_indices = @transform_4, window_bounds = array<i64: 1, 12, 16>}]} {
    %c0 = arith.constant 0 : index
    %c0_0 = arith.constant 0 : index
    %c0_1 = arith.constant 0 : index
    %0 = vector.load %arg2[%c0, %c0_0, %c0_1] : memref<1x4x16xf32, #tpu.memory_space<vmem>>, vector<1x4x16xf32>
    %1 = vector.shape_cast %0 : vector<1x4x16xf32> to vector<4x16xf32>
    %c0_2 = arith.constant 0 : index
    %c0_3 = arith.constant 0 : index
    %2 = vector.load %arg4[%c0_2, %c0_3] : memref<4x1xf32, #tpu.memory_space<vmem>>, vector<4x1xf32>
    %3 = vector.broadcast %2 : vector<4x1xf32> to vector<4x16xf32>
    %4 = arith.mulf %1, %3 : vector<4x16xf32>
    %c0_4 = arith.constant 0 : index
    %c0_5 = arith.constant 0 : index
    %5 = vector.load %arg5[%c0_4, %c0_5] : memref<4x1xf32, #tpu.memory_space<vmem>>, vector<4x1xf32>
    %6 = vector.broadcast %5 : vector<4x1xf32> to vector<4x16xf32>
    %7 = arith.addf %4, %6 : vector<4x16xf32>
    %cst = arith.constant 0.00999999977 : f32
    %8 = vector.broadcast %cst : f32 to vector<4x16xf32>
    %9 = arith.mulf %8, %7 : vector<4x16xf32>
    %10 = arith.maximumf %7, %9 : vector<4x16xf32>
    %c0_6 = arith.constant 0 : index
    %c0_7 = arith.constant 0 : index
    %11 = vector.load %arg3[%c0_6, %c0_7] : memref<8x4xf32, #tpu.memory_space<vmem>>, vector<8x4xf32>
    %cst_8 = arith.constant dense<0.000000e+00> : vector<8x16xf32>
    %12 = tpu.matmul %11, %10, %cst_8 {dimension_numbers = #tpu.dot_dimension_numbers<[1], [0], [0], [1], [0, 0, 1, 1], [], []>} : vector<8x4xf32>, vector<4x16xf32>, vector<8x16xf32> -> vector<8x16xf32>
    %c0_9 = arith.constant 0 : index
    %c0_10 = arith.constant 0 : index
    %c0_11 = arith.constant 0 : index
    %13 = vector.load %arg6[%c0_9, %c0_10, %c0_11] : memref<1x12x16xf32, #tpu.memory_space<vmem>>, vector<1x4x16xf32>
    %14 = vector.shape_cast %13 : vector<1x4x16xf32> to vector<4x16xf32>
    %15 = vector.shape_cast %1 : vector<4x16xf32> to vector<1x4x16xf32>
    tpu.vector_store %arg6[%c0_9, %c0_10, %c0_11], %15 {strides = array<i32>} : memref<1x12x16xf32, #tpu.memory_space<vmem>>, vector<1x4x16xf32>,
    %c0_12 = arith.constant 0 : index
    %c4 = arith.constant 4 : index
    %c0_13 = arith.constant 0 : index
    %16 = vector.load %arg6[%c0_12, %c4, %c0_13] : memref<1x12x16xf32, #tpu.memory_space<vmem>>, vector<1x8x16xf32>
    %17 = vector.shape_cast %16 : vector<1x8x16xf32> to vector<8x16xf32>
    %18 = vector.shape_cast %12 : vector<8x16xf32> to vector<1x8x16xf32>
    tpu.vector_store %arg6[%c0_12, %c4, %c0_13], %18 {strides = array<i32>} : memref<1x12x16xf32, #tpu.memory_space<vmem>>, vector<1x8x16xf32>,
    return
  }
  func.func @transform_0(%arg0: i32, %arg1: i32) -> (i32, i32, i32) {
    %c0_i32 = arith.constant 0 : i32
    %c0_i32_0 = arith.constant 0 : i32
    return %arg0, %c0_i32, %arg1 : i32, i32, i32
  }
  func.func @transform_1(%arg0: i32, %arg1: i32) -> (i32, i32) {
    %c0_i32 = arith.constant 0 : i32
    %c0_i32_0 = arith.constant 0 : i32
    %c0_i32_1 = arith.constant 0 : i32
    return %c0_i32, %c0_i32_0 : i32, i32
  }
  func.func @transform_2(%arg0: i32, %arg1: i32) -> (i32, i32) {
    %c0_i32 = arith.constant 0 : i32
    %c0_i32_0 = arith.constant 0 : i32
    %c0_i32_1 = arith.constant 0 : i32
    return %c0_i32, %c0_i32_0 : i32, i32
  }
  func.func @transform_3(%arg0: i32, %arg1: i32) -> (i32, i32) {
    %c0_i32 = arith.constant 0 : i32
    %c0_i32_0 = arith.constant 0 : i32
    %c0_i32_1 = arith.constant 0 : i32
    return %c0_i32, %c0_i32_0 : i32, i32
  }
  func.func @transform_4(%arg0: i32, %arg1: i32) -> (i32, i32, i32) {
    %c0_i32 = arith.constant 0 : i32
    %c0_i32_0 = arith.constant 0 : i32
    return %arg0, %c0_i32, %arg1 : i32, i32, i32
  }
}

</mosaic_0001>

<llo_original>
// kernel: tpu_custom_call.1
$region0: #{tpu_custom_call.1}
  #allocation0 [shape = 'u32[]', space=smem, size = 0x4, offset = 0x4, fixed_abs, tag = 'smem constant byte address 0x4 - core index']
  #allocation1 [shape = 'u32[72,128]{1,0:T(1,128)}', space=vmem, size = 0x9000, scoped, tag = 'internal scratch']
  %s0 = inlined_call_operand.vmem [shape: f32[2,4,16], index: 0, kind: input, shape index: {}]
  %s1 = inlined_call_operand.vmem [shape: f32[8,4], index: 1, kind: input, shape index: {}]
  %s2 = inlined_call_operand.vmem [shape: f32[4,1], index: 2, kind: input, shape index: {}]
  %s3 = inlined_call_operand.vmem [shape: f32[4,1], index: 3, kind: input, shape index: {}]
  %s4 = inlined_call_operand.vmem [shape: f32[2,12,16], index: 4, kind: output, shape index: {}]
  %s5 = sld [smem:[#allocation0]]
  $region49: #{tpu_custom_call.1} parent=0
    _
  %s7 = ssub.s32 1, %s5
  %s8 = scalar_select 0, %s7, %s5
  loop: start=0, step=1, limit=4
  $region2: #{tpu_custom_call.1} parent=0 // loop_pre_header
    _
  $region3: #{tpu_custom_call.1} parent=0 // loop_header
    %s10 = sphi 0, %s14
    %p11 = scmp.ge.s32.totalorder %s10, 4
    %s17 = sphi 0, %s29
    %s18 = sphi 0, %s25
    %s19 = sphi 0, %s17
    %s20 = sphi 0, %s18
    %s21 = sphi 0, %s19
    %s22 = sphi 0, %s20
    %s34 = sphi 0, %s36
    %s37 = sphi 0, %s34
    %s38 = sphi 0, %s37
    %s54 = sphi 0, %s38
    %s58 = sphi 0, %s58
    %s60 = sphi 0, %s58
    %s61 = sphi 0, %s60
    %s75 = sphi 0, %s61
    %s79 = sphi 0, %s79
    %s81 = sphi 0, %s79
    %s82 = sphi 0, %s81
    %s96 = sphi 0, %s82
    %s100 = sphi 0, %s100
    %s102 = sphi 0, %s100
    %s103 = sphi 0, %s102
    %s117 = sphi 0, %s103
    %s125 = sphi 0, %s127
    %s128 = sphi 0, %s125
    %s129 = sphi 0, %s128
    %s145 = sphi 0, %s129
  $region4: #{tpu_custom_call.1} parent=0 // loop_header_branch
    %13 = sbr.rel (%p11) target = $region8
  $region5: #{tpu_custom_call.1} parent=0 // loop_body
    %s15 = ssub.s32 %s10, 1
    %s16 = ssub.s32 %s10, 2
    %s23 = sadd.s32 1, %s18
    %p24 = scmp.ge.s32.totalorder %s23, 1
    %s25 = scalar_select %p24, 0, %s23
    %s26 = sadd.s32 1, %s17
    %s27 = scalar_select %p24, %s26, %s17
    %p28 = scmp.ge.s32.totalorder %s27, 2
    %s29 = scalar_select %p28, 0, %s27
    %s30 = ssub.s32 %s17, %s29
    %s31 = ssub.s32 %s18, %s25
    %s32 = sor.u32 %s30, %s31
    %p33 = scmp.eq.s32.totalorder %s32, 0
    %s35 = sadd.s32 %s34, 1
    %s36 = scalar_select %p33, %s34, %s35
    %p39 = pneg %p33
    %p40 = scmp.eq.s32.totalorder %s10, 1
    %p41 = por %p39, %p40
    %p42 = scmp.ne.s32.totalorder %s34, %s37
    %p43 = scmp.eq.s32.totalorder %s10, 0
    %p44 = por %p42, %p43
    %p45 = scmp.ne.s32.totalorder %s34, %s37
    %p46 = scmp.eq.s32.totalorder %s15, 1
    %p47 = por %p45, %p46
    %p48 = scmp.ne.s32.totalorder %s37, %s38
    %p49 = scmp.eq.s32.totalorder %s15, 0
    %p50 = por %p48, %p49
    %p51 = scmp.ne.s32.totalorder %s37, %s38
    %p52 = scmp.eq.s32.totalorder %s16, 1
    %p53 = por %p51, %p52
    %p55 = scmp.ne.s32.totalorder %s38, %s54
    %p56 = scmp.eq.s32.totalorder %s16, 0
    %p57 = por %p55, %p56
    %s59 = sadd.s32 %s58, 1
    %p62 = scmp.eq.s32.totalorder %s10, 1
    %p63 = scmp.ne.s32.totalorder %s58, %s60
    %p64 = scmp.eq.s32.totalorder %s10, 0
    %p65 = por %p63, %p64
    %p66 = scmp.ne.s32.totalorder %s58, %s60
    %p67 = scmp.eq.s32.totalorder %s15, 1
    %p68 = por %p66, %p67
    %p69 = scmp.ne.s32.totalorder %s60, %s61
    %p70 = scmp.eq.s32.totalorder %s15, 0
    %p71 = por %p69, %p70
    %p72 = scmp.ne.s32.totalorder %s60, %s61
    %p73 = scmp.eq.s32.totalorder %s16, 1
    %p74 = por %p72, %p73
    %p76 = scmp.ne.s32.totalorder %s61, %s75
    %p77 = scmp.eq.s32.totalorder %s16, 0
    %p78 = por %p76, %p77
    %s80 = sadd.s32 %s79, 1
    %p83 = scmp.eq.s32.totalorder %s10, 1
    %p84 = scmp.ne.s32.totalorder %s79, %s81
    %p85 = scmp.eq.s32.totalorder %s10, 0
    %p86 = por %p84, %p85
    %p87 = scmp.ne.s32.totalorder %s79, %s81
    %p88 = scmp.eq.s32.totalorder %s15, 1
    %p89 = por %p87, %p88
    %p90 = scmp.ne.s32.totalorder %s81, %s82
    %p91 = scmp.eq.s32.totalorder %s15, 0
    %p92 = por %p90, %p91
    %p93 = scmp.ne.s32.totalorder %s81, %s82
    %p94 = scmp.eq.s32.totalorder %s16, 1
    %p95 = por %p93, %p94
    %p97 = scmp.ne.s32.totalorder %s82, %s96
    %p98 = scmp.eq.s32.totalorder %s16, 0
    %p99 = por %p97, %p98
    %s101 = sadd.s32 %s100, 1
    %p104 = scmp.eq.s32.totalorder %s10, 1
    %p105 = scmp.ne.s32.totalorder %s100, %s102
    %p106 = scmp.eq.s32.totalorder %s10, 0
    %p107 = por %p105, %p106
    %p108 = scmp.ne.s32.totalorder %s100, %s102
    %p109 = scmp.eq.s32.totalorder %s15, 1
    %p110 = por %p108, %p109
    %p111 = scmp.ne.s32.totalorder %s102, %s103
    %p112 = scmp.eq.s32.totalorder %s15, 0
    %p113 = por %p111, %p112
    %p114 = scmp.ne.s32.totalorder %s102, %s103
    %p115 = scmp.eq.s32.totalorder %s16, 1
    %p116 = por %p114, %p115
    %p118 = scmp.ne.s32.totalorder %s103, %s117
    %p119 = scmp.eq.s32.totalorder %s16, 0
    %p120 = por %p118, %p119
    %s121 = ssub.s32 %s17, %s29
    %s122 = ssub.s32 %s18, %s25
    %s123 = sor.u32 %s121, %s122
    %p124 = scmp.eq.s32.totalorder %s123, 0
    %s126 = sadd.s32 %s125, 1
    %s127 = scalar_select %p124, %s125, %s126
    %p130 = pneg %p124
    %p131 = scmp.eq.s32.totalorder %s10, 1
    %p132 = por %p130, %p131
    %p133 = scmp.ne.s32.totalorder %s125, %s128
    %p134 = scmp.eq.s32.totalorder %s10, 0
    %p135 = por %p133, %p134
    %p136 = scmp.ne.s32.totalorder %s125, %s128
    %p137 = scmp.eq.s32.totalorder %s15, 1
    %p138 = por %p136, %p137
    %p139 = scmp.ne.s32.totalorder %s128, %s129
    %p140 = scmp.eq.s32.totalorder %s15, 0
    %p141 = por %p139, %p140
    %p142 = scmp.ne.s32.totalorder %s128, %s129
    %p143 = scmp.eq.s32.totalorder %s16, 1
    %p144 = por %p142, %p143
    %p146 = scmp.ne.s32.totalorder %s129, %s145
    %p147 = scmp.eq.s32.totalorder %s16, 0
    %p148 = por %p146, %p147
    %p149 = scmp.le.s32.totalorder 1, %s10
    %p150 = scmp.lt.s32.totalorder %s10, 3
    %p151 = pnand %p149, %p150
    %p152 = pneg %p151
    // Predicated region
    $region9: #{tpu_custom_call.1} parent=5 // pred_check
      _
    $region10: #{tpu_custom_call.1} parent=5 // pred_check_branch
      %154 = sbr.rel (%p151) target = $region12
    $region11: #{tpu_custom_call.1} parent=5 // pred_region
      %s155 = ssub.s32 %s10, 1
      // Predicated region
      $region13: #{tpu_custom_call.1} parent=11 // pred_check
        %p156 = pneg %p71
      $region14: #{tpu_custom_call.1} parent=11 // pred_check_branch
        %158 = sbr.rel (%p156) target = $region16
      $region15: #{tpu_custom_call.1} parent=11 // pred_region
        _
      $region16: #{tpu_custom_call.1} parent=11 // pred_fallthru
        _
      // Predicated region
      $region17: #{tpu_custom_call.1} parent=11 // pred_check
        %p159 = pneg %p92
      $region18: #{tpu_custom_call.1} parent=11 // pred_check_branch
        %161 = sbr.rel (%p159) target = $region20
      $region19: #{tpu_custom_call.1} parent=11 // pred_region
        _
      $region20: #{tpu_custom_call.1} parent=11 // pred_fallthru
        _
      // Predicated region
      $region21: #{tpu_custom_call.1} parent=11 // pred_check
        %p162 = pneg %p113
      $region22: #{tpu_custom_call.1} parent=11 // pred_check_branch
        %164 = sbr.rel (%p162) target = $region24
      $region23: #{tpu_custom_call.1} parent=11 // pred_region
        _
      $region24: #{tpu_custom_call.1} parent=11 // pred_fallthru
        _
    $region12: #{tpu_custom_call.1} parent=5 // pred_fallthru
      _
    %p165 = scmp.lt.s32.totalorder %s10, 2
    // Predicated region
    $region25: #{tpu_custom_call.1} parent=5 // pred_check
      %p166 = pneg %p165
    $region26: #{tpu_custom_call.1} parent=5 // pred_check_branch
      %168 = sbr.rel (%p166) target = $region28
    $region27: #{tpu_custom_call.1} parent=5 // pred_region
      // Predicated region
      $region29: #{tpu_custom_call.1} parent=27 // pred_check
        %p169 = pneg %p44
      $region30: #{tpu_custom_call.1} parent=27 // pred_check_branch
        %171 = sbr.rel (%p169) target = $region32
      $region31: #{tpu_custom_call.1} parent=27 // pred_region
        %p172 = scmp.lt.s32.totalorder %s17, 1
        %s173 = scalar_select %p172, %s17, 1
        %p174 = scmp.lt.s32.totalorder %s18, 0
        %s175 = scalar_select %p174, %s18, 0
        %s176 = sadd.s32 %s175, %s173
        %s177 = smul.addr %s176, 4
        %s178 = scalar_lea.vmem %s0, %s177
      $region32: #{tpu_custom_call.1} parent=27 // pred_fallthru
        _
    $region28: #{tpu_custom_call.1} parent=5 // pred_fallthru
      _
    %p179 = scmp.le.s32.totalorder 1, %s10
    %p180 = scmp.lt.s32.totalorder %s10, 3
    %p181 = pnand %p179, %p180
    %p182 = pneg %p181
    // Predicated region
    $region33: #{tpu_custom_call.1} parent=5 // pred_check
      _
    $region34: #{tpu_custom_call.1} parent=5 // pred_check_branch
      %184 = sbr.rel (%p181) target = $region36
    $region35: #{tpu_custom_call.1} parent=5 // pred_region
      %s185 = ssub.s32 %s10, 1
      %p186 = scmp.lt.s32.totalorder %s19, 1
      %s187 = scalar_select %p186, %s19, 1
      %p188 = scmp.lt.s32.totalorder %s20, 0
      %s189 = scalar_select %p188, %s20, 0
      %s190 = sadd.s32 %s189, %s187
      %s191 = smul.addr %s190, 4
      %s192 = scalar_lea.vmem %s0, %s191
      %p193 = pneg %p50
      %p194 = pneg %p47
      %p195 = pneg %p71
      %p196 = pneg %p68
      %p197 = pneg %p92
      %p198 = pneg %p89
      %p199 = pneg %p113
      %p200 = pneg %p110
      %p201 = pneg %p141
      %p202 = pneg %p138
      %p203 = scmp.lt.s32.totalorder %s19, 1
      %s204 = scalar_select %p203, %s19, 1
      %p205 = scmp.lt.s32.totalorder %s20, 0
      %s206 = scalar_select %p205, %s20, 0
      %s207 = smul.addr %s204, 2
      %s208 = sadd.s32 %s206, %s207
      %s209 = smul.addr %s208, 8
      %s210 = scalar_lea.vmem %s4, %s209
      %p211 = scmp.lt.s32.totalorder %s19, 1
      %s212 = scalar_select %p211, %s19, 1
      %p213 = scmp.lt.s32.totalorder %s20, 0
      %s214 = scalar_select %p213, %s20, 0
      %s215 = sadd.s32 %s214, %s212
      %s216 = smul.addr %s215, 4
      %s217 = scalar_lea.vmem %s0, %s216
      %p218 = scmp.lt.s32.totalorder %s19, 1
      %s219 = scalar_select %p218, %s19, 1
      %p220 = scmp.lt.s32.totalorder %s20, 0
      %s221 = scalar_select %p220, %s20, 0
      %s222 = smul.addr %s219, 2
      %s223 = sadd.s32 %s221, %s222
      %s224 = smul.addr %s223, 8
      %s225 = scalar_lea.vmem %s4, %s224
      %v226 = vld [vmem:[%s217] sm:$0xf]
      %v227 = vld [vmem:[%s2] sm:$0xf]
      %229 = vset.pattern.permute.xlu0 0
      %230 = vperm.xlu0 %229, %v227
      %v231 = vpop.permute.xlu0 %230
      %v233 = vmul.f32 %v226, %v231
      %v234 = vld [vmem:[%s3] sm:$0xf]
      %236 = vset.pattern.permute.xlu0 0
      %237 = vperm.xlu0 %236, %v234
      %v238 = vpop.permute.xlu0 %237
      %v240 = vadd.f32 %v233, %v238
      %v241 = vmul.f32 %v240, 0.01
      %v242 = vmax.f32 %v240, %v241
      %v243 = vld [vmem:[%s1] sm:$0xff]
      %vm244 = vcmask 31744
      %v246 = vsel %vm244, %v243, 0
      %vm248 = vcmask 1043456
      %v250 = vsel %vm248, %v242, 0
      %252 = vmatpush.msra.mxu0 0.0
      %253 = vmatpush.msra.mxu0 0.0
      %254 = vmatpush.msra.mxu0 0.0
      %255 = vmatpush.msra.mxu0 0.0
      %256 = vmatpush.msra.mxu0 0.0
      %257 = vmatpush.msra.mxu0 0.0
      %258 = vmatpush.msra.mxu0 0.0
      %259 = vmatpush.msra.mxu0 0.0
      %260 = vmatpush.msra.mxu0 0.0
      %261 = vmatpush.msra.mxu0 0.0
      %262 = vmatpush.msra.mxu0 0.0
      %263 = vmatpush.msra.mxu0 0.0
      %264 = vmatpush.msra.mxu0 0.0
      %265 = vmatpush.msra.mxu0 0.0
      %266 = vmatpush.msra.mxu0 0.0
      %267 = vmatpush.msra.mxu0 %v250
      %268 = vmatmul.f32.gmra.mxu0 %v246
      %v269 = vpop.f32.mrf.mxu0
      %v270 = vadd.f32 0.0, %v269
      %271 = vdwg.mxu0
      %vm272 = vcmask 125952
      %273 = vst.msk [vmem:[%s225] sm:$0xf] %vm272, %v226
      %vm274 = vcmask 130048
      %275 = vst.msk [vmem:[%s225 + $0x4] sm:$0xff] %vm274, %v270
      %p276 = scmp.lt.s32.totalorder %s19, 1
      %s277 = scalar_select %p276, %s19, 1
      %p278 = scmp.lt.s32.totalorder %s20, 0
      %s279 = scalar_select %p278, %s20, 0
      %s280 = smul.addr %s277, 2
      %s281 = sadd.s32 %s279, %s280
      %s282 = smul.addr %s281, 8
      %s283 = scalar_lea.vmem %s4, %s282
      // Predicated region
      $region37: #{tpu_custom_call.1} parent=35 // pred_check
        %p284 = pneg %p138
      $region38: #{tpu_custom_call.1} parent=35 // pred_check_branch
        %286 = sbr.rel (%p284) target = $region40
      $region39: #{tpu_custom_call.1} parent=35 // pred_region
        _
      $region40: #{tpu_custom_call.1} parent=35 // pred_fallthru
        _
    $region36: #{tpu_custom_call.1} parent=5 // pred_fallthru
      _
    %p287 = scmp.le.s32.totalorder 2, %s10
    // Predicated region
    $region41: #{tpu_custom_call.1} parent=5 // pred_check
      %p288 = pneg %p287
    $region42: #{tpu_custom_call.1} parent=5 // pred_check_branch
      %290 = sbr.rel (%p288) target = $region44
    $region43: #{tpu_custom_call.1} parent=5 // pred_region
      %s291 = ssub.s32 %s10, 2
      // Predicated region
      $region45: #{tpu_custom_call.1} parent=43 // pred_check
        %p292 = pneg %p144
      $region46: #{tpu_custom_call.1} parent=43 // pred_check_branch
        %294 = sbr.rel (%p292) target = $region48
      $region47: #{tpu_custom_call.1} parent=43 // pred_region
        %p295 = scmp.lt.s32.totalorder %s21, 1
        %s296 = scalar_select %p295, %s21, 1
        %p297 = scmp.lt.s32.totalorder %s22, 0
        %s298 = scalar_select %p297, %s22, 0
        %s299 = smul.addr %s296, 2
        %s300 = sadd.s32 %s298, %s299
        %s301 = smul.addr %s300, 8
        %s302 = scalar_lea.vmem %s4, %s301
      $region48: #{tpu_custom_call.1} parent=43 // pred_fallthru
        _
    $region44: #{tpu_custom_call.1} parent=5 // pred_fallthru
      _
  $region6: #{tpu_custom_call.1} parent=0 // loop_footer
    %s14 = sadd.s32 1, %s10
  $region7: #{tpu_custom_call.1} parent=0 // loop_footer_branch
    %9 = sbr.rel target = $region3
  $region8: #{tpu_custom_call.1} parent=0 // loop_exit
    _

</llo_original>
